<compile_context>
chip_gen: v7x
topology: tpu7x:2x2x1
jax: 0.10.0
libtpu: 0.0.40
codegen_flags: <defaults>
</compile_context>

<pallas_src>
import functools

import jax
import jax.numpy as jnp
from jax.experimental import pallas as pl
from jax.experimental.pallas import tpu as pltpu

_LANES = 128      # batch elements per vreg row (lane width)
_TB_MAX = 2048    # max batch-tile (lanes) per grid step


def _round_up(v, m):
    return ((v + m - 1) // m) * m


def _mlp_kernel(x_ref, w1b_ref, b1b_ref, w2b_ref, b2_ref, o_ref, *, d, n_groups):
    """One batch tile of relu(W1^T x + b1) . W2 + b2, batch-on-lanes.

    x_ref  : (d, tb)          -- batch tile, lane-dense
    w1b_ref: (d, H_pad, 128)  -- W1[i, h] replicated across 128 lanes
    b1b_ref: (H_pad, 128)     -- b1 replicated across lanes
    w2b_ref: (H_pad, 128)     -- W2[:, 0] replicated across lanes
    b2_ref : (1, 1) in SMEM
    o_ref  : (1, tb)          -- lane-dense output row
    """
    b2 = b2_ref[0, 0]
    for g in range(n_groups):                  # static unroll over 128-lane groups
        lo = g * _LANES
        h = b1b_ref[...]                       # (H_pad, 128)
        for i in range(d):                     # static, tiny (d = state_dim = 2)
            # (1,128) batch row (sublane broadcast) * pre-broadcast weight slab (VALU).
            h = h + x_ref[i:i + 1, lo:lo + _LANES] * w1b_ref[i]
        h = jnp.maximum(h, 0.0)                # ReLU; padded hidden rows stay 0
        # Layer 2: VALU mul + sublane-axis reduce -> lane-dense (1, 128).
        o = jnp.sum(h * w2b_ref[...], axis=0, keepdims=True)
        o_ref[0:1, lo:lo + _LANES] = o + b2


def prepare_cem_params(w1, b1, w2, b2):
    """Pad + lane-broadcast the parameters ONCE (hoisted out of the per-call path).

    w1: (D, H), b1: (H,), w2: (H, 1), b2: (1,) or scalar.
    Returns (w1b, b1b, w2b, b2p) ready for cem_forward.
    """
    D, H = w1.shape
    h_pad = max(8, _round_up(H, 8))            # hidden units live on sublanes
    f32 = jnp.float32
    w1b = jnp.zeros((D, h_pad, _LANES), f32).at[:, :H, :].set(
        jnp.broadcast_to(w1.astype(f32)[:, :, None], (D, H, _LANES)))
    b1b = jnp.zeros((h_pad, _LANES), f32).at[:H, :].set(
        jnp.broadcast_to(b1.astype(f32)[:, None], (H, _LANES)))
    w2b = jnp.zeros((h_pad, _LANES), f32).at[:H, :].set(
        jnp.broadcast_to(w2.astype(f32)[:, 0][:, None], (H, _LANES)))
    b2p = jnp.asarray(b2, f32).reshape(1, 1)
    return w1b, b1b, w2b, b2p


@jax.jit
def cem_forward(x, w1b, b1b, w2b, b2):
    """Pallas implementation of CEM.forward: (B, state_dim) f32 -> (B, 1) f32."""
    B, D = x.shape
    if D != w1b.shape[0]:
        raise ValueError(
            f"x has {D} features but params were prepared for {w1b.shape[0]}")
    h_pad = w1b.shape[1]

    # Batch tiling (on lanes). Tiles are multiples of 128 lanes and exactly cover
    # the (slightly) padded lane extent (no ragged tiles); >=2 tiles whenever
    # there is enough batch so v7x's two TensorCores can both work.
    b128 = _round_up(max(B, 1), _LANES)
    if b128 >= 2 * _LANES:
        n_tiles = max(2, -(-b128 // _TB_MAX))
    else:
        n_tiles = 1
    tb = _round_up(-(-b128 // n_tiles), _LANES)
    b_pad = n_tiles * tb

    # The only per-call prep: one fused transpose (+ small lane pad) of x.
    x_t = x.astype(jnp.float32).T                       # (D, B)
    if b_pad != B:
        x_t = jnp.pad(x_t, ((0, 0), (0, b_pad - B)))

    out_row = pl.pallas_call(
        functools.partial(_mlp_kernel, d=D, n_groups=tb // _LANES),
        out_shape=jax.ShapeDtypeStruct((1, b_pad), jnp.float32),
        grid=(n_tiles,),
        in_specs=[
            pl.BlockSpec((D, tb), lambda i: (0, i)),                # x: one tile/step
            pl.BlockSpec((D, h_pad, _LANES), lambda i: (0, 0, 0)),  # W1 slabs: resident
            pl.BlockSpec((h_pad, _LANES), lambda i: (0, 0)),        # b1 slab: resident
            pl.BlockSpec((h_pad, _LANES), lambda i: (0, 0)),        # W2 slab: resident
            pl.BlockSpec(memory_space=pltpu.MemorySpace.SMEM),      # b2 scalar
        ],
        out_specs=pl.BlockSpec((1, tb), lambda i: (0, i)),          # lane-dense output
        compiler_params=pltpu.CompilerParams(
            dimension_semantics=("parallel",),                      # megacore on v7x
        ),
    )(x_t, w1b, b1b, w2b, b2)

    return out_row[0, :B].reshape(B, 1)


def init_cem_params(key, state_dim=2, hidden=100, out=1):
    """Deterministic PyTorch-style (uniform +/- 1/sqrt(fan_in)) initialization."""
    k1, k2, k3, k4 = jax.random.split(key, 4)
    bound1 = 1.0 / jnp.sqrt(float(state_dim))
    bound2 = 1.0 / jnp.sqrt(float(hidden))
    w1 = jax.random.uniform(k1, (state_dim, hidden), jnp.float32, -bound1, bound1)
    b1 = jax.random.uniform(k2, (hidden,), jnp.float32, -bound1, bound1)
    w2 = jax.random.uniform(k3, (hidden, out), jnp.float32, -bound2, bound2)
    b2 = jax.random.uniform(k4, (out,), jnp.float32, -bound2, bound2)
    return w1, b1, w2, b2


if __name__ == "__main__":
    key = jax.random.PRNGKey(0)
    pkey, xkey, x2key = jax.random.split(key, 3)

    state_dim, hidden = 2, 100
    w1, b1, w2, b2 = init_cem_params(pkey, state_dim=state_dim, hidden=hidden, out=1)
    params = prepare_cem_params(w1, b1, w2, b2)   # padding/broadcast hoisted: done once

    def ref_fwd(xx):
        return jnp.maximum(xx @ w1 + b1, 0.0) @ w2 + b2

    # Small single-tile batch.
    x = jax.random.normal(xkey, (8, state_dim), jnp.float32)
    out = jax.block_until_ready(cem_forward(x, *params))
    assert out.shape == (8, 1)
    assert jnp.allclose(out, ref_fwd(x), atol=1e-4, rtol=1e-5), "mismatch (B=8)"

    # Larger batch exercising the multi-tile grid (grid=(2,)) + lane padding.
    x2 = jax.random.normal(x2key, (600, state_dim), jnp.float32)
    out2 = jax.block_until_ready(cem_forward(x2, *params))
    assert out2.shape == (600, 1)
    assert jnp.allclose(out2, ref_fwd(x2), atol=1e-4, rtol=1e-5), "mismatch (B=600)"

    # TODO(synk): get_action (.item host scalar / tanh post-proc) and update_policy
    # (Adam step, CrossEntropyLoss backward) are host/training logic, not forward.
    print("KERNEL_OK")
</pallas_src>

<mosaic_0001>
module attributes {stable_mosaic.version = 11 : i64} {
  func.func @_mlp_kernel(%arg0: i32, %arg1: memref<2x128xf32, #tpu.memory_space<vmem>>, %arg2: memref<2x104x128xf32, #tpu.memory_space<vmem>>, %arg3: memref<104x128xf32, #tpu.memory_space<vmem>>, %arg4: memref<104x128xf32, #tpu.memory_space<vmem>>, %arg5: memref<1x1xf32, #tpu.memory_space<smem>>, %arg6: memref<1x128xf32, #tpu.memory_space<vmem>>) attributes {dimension_semantics = [#tpu.dimension_semantics<parallel>], iteration_bounds = array<i64: 1>, scalar_prefetch = 0 : i64, scratch_operands = 0 : i64, tpu.core_type = #tpu.core_type<tc>, window_params = [{transform_indices = @transform_0, window_bounds = array<i64: 2, 128>}, {pipeline_mode = #tpu.pipeline_mode<synchronous>, transform_indices = @transform_1, window_bounds = array<i64: 2, 104, 128>}, {pipeline_mode = #tpu.pipeline_mode<synchronous>, transform_indices = @transform_2, window_bounds = array<i64: 104, 128>}, {pipeline_mode = #tpu.pipeline_mode<synchronous>, transform_indices = @transform_3, window_bounds = array<i64: 104, 128>}, {transform_indices = @transform_4, window_bounds = array<i64: 1, 1>}, {transform_indices = @transform_5, window_bounds = array<i64: 1, 128>}]} {
    %c0 = arith.constant 0 : index
    %c0_0 = arith.constant 0 : index
    %0 = memref.load %arg5[%c0, %c0_0] : memref<1x1xf32, #tpu.memory_space<smem>>
    %c0_1 = arith.constant 0 : index
    %c0_2 = arith.constant 0 : index
    %1 = vector.load %arg3[%c0_1, %c0_2] : memref<104x128xf32, #tpu.memory_space<vmem>>, vector<104x128xf32>
    %c0_3 = arith.constant 0 : index
    %c0_4 = arith.constant 0 : index
    %2 = vector.load %arg1[%c0_3, %c0_4] : memref<2x128xf32, #tpu.memory_space<vmem>>, vector<1x128xf32>
    %c0_5 = arith.constant 0 : index
    %c0_6 = arith.constant 0 : index
    %c0_7 = arith.constant 0 : index
    %3 = vector.load %arg2[%c0_5, %c0_6, %c0_7] : memref<2x104x128xf32, #tpu.memory_space<vmem>>, vector<1x104x128xf32>
    %4 = vector.shape_cast %3 : vector<1x104x128xf32> to vector<104x128xf32>
    %5 = vector.broadcast %2 : vector<1x128xf32> to vector<104x128xf32>
    %6 = arith.mulf %5, %4 : vector<104x128xf32>
    %7 = arith.addf %1, %6 : vector<104x128xf32>
    %c1 = arith.constant 1 : index
    %c0_8 = arith.constant 0 : index
    %8 = vector.load %arg1[%c1, %c0_8] : memref<2x128xf32, #tpu.memory_space<vmem>>, vector<1x128xf32>
    %c1_9 = arith.constant 1 : index
    %c0_10 = arith.constant 0 : index
    %c0_11 = arith.constant 0 : index
    %9 = vector.load %arg2[%c1_9, %c0_10, %c0_11] : memref<2x104x128xf32, #tpu.memory_space<vmem>>, vector<1x104x128xf32>
    %10 = vector.shape_cast %9 : vector<1x104x128xf32> to vector<104x128xf32>
    %11 = vector.broadcast %8 : vector<1x128xf32> to vector<104x128xf32>
    %12 = arith.mulf %11, %10 : vector<104x128xf32>
    %13 = arith.addf %7, %12 : vector<104x128xf32>
    %cst = arith.constant 0.000000e+00 : f32
    %14 = vector.broadcast %cst : f32 to vector<104x128xf32>
    %15 = arith.maximumf %13, %14 : vector<104x128xf32>
    %c0_12 = arith.constant 0 : index
    %c0_13 = arith.constant 0 : index
    %16 = vector.load %arg4[%c0_12, %c0_13] : memref<104x128xf32, #tpu.memory_space<vmem>>, vector<104x128xf32>
    %17 = arith.mulf %15, %16 : vector<104x128xf32>
    %cst_14 = arith.constant dense<0.000000e+00> : vector<128xf32>
    %18 = vector.multi_reduction <add>, %17, %cst_14 [0] : vector<104x128xf32> to vector<128xf32>
    %19 = vector.shape_cast %18 : vector<128xf32> to vector<1x128xf32>
    %20 = vector.broadcast %0 : f32 to vector<1x128xf32>
    %21 = arith.addf %19, %20 : vector<1x128xf32>
    %c0_15 = arith.constant 0 : index
    %c0_16 = arith.constant 0 : index
    %22 = vector.load %arg6[%c0_15, %c0_16] : memref<1x128xf32, #tpu.memory_space<vmem>>, vector<1x128xf32>
    tpu.vector_store %arg6[%c0_15, %c0_16], %21 {strides = array<i32>} : memref<1x128xf32, #tpu.memory_space<vmem>>, vector<1x128xf32>,
    return
  }
  func.func @transform_0(%arg0: i32) -> (i32, i32) {
    %c0_i32 = arith.constant 0 : i32
    %c0_i32_0 = arith.constant 0 : i32
    return %c0_i32, %arg0 : i32, i32
  }
  func.func @transform_1(%arg0: i32) -> (i32, i32, i32) {
    %c0_i32 = arith.constant 0 : i32
    %c0_i32_0 = arith.constant 0 : i32
    %c0_i32_1 = arith.constant 0 : i32
    %c0_i32_2 = arith.constant 0 : i32
    return %c0_i32, %c0_i32_0, %c0_i32_1 : i32, i32, i32
  }
  func.func @transform_2(%arg0: i32) -> (i32, i32) {
    %c0_i32 = arith.constant 0 : i32
    %c0_i32_0 = arith.constant 0 : i32
    %c0_i32_1 = arith.constant 0 : i32
    return %c0_i32, %c0_i32_0 : i32, i32
  }
  func.func @transform_3(%arg0: i32) -> (i32, i32) {
    %c0_i32 = arith.constant 0 : i32
    %c0_i32_0 = arith.constant 0 : i32
    %c0_i32_1 = arith.constant 0 : i32
    return %c0_i32, %c0_i32_0 : i32, i32
  }
  func.func @transform_4(%arg0: i32) -> (i32, i32) {
    %c0_i32 = arith.constant 0 : i32
    %c0_i32_0 = arith.constant 0 : i32
    %c0_i32_1 = arith.constant 0 : i32
    return %c0_i32, %c0_i32_0 : i32, i32
  }
  func.func @transform_5(%arg0: i32) -> (i32, i32) {
    %c0_i32 = arith.constant 0 : i32
    %c0_i32_0 = arith.constant 0 : i32
    return %c0_i32, %arg0 : i32, i32
  }
}

</mosaic_0001>

<llo_original>
// kernel: cem_forward.1
$region0: #{cem_forward.1}
  #allocation0 [shape = 'u32[]', space=smem, size = 0x4, offset = 0x4, fixed_abs, tag = 'smem constant byte address 0x4 - core index']
  #allocation1 [shape = 'u32[144,128]{1,0:T(1,128)}', space=vmem, size = 0x12000, scoped, tag = 'internal scratch']
  #allocation2 [shape = 'f32[1,1]{1,0:T(1,128)S(6)}', space=smem, size = 0x200, scoped, tag = 'scoped memory for cem_forward.1']
  %s0 = inlined_call_operand.vmem [shape: f32[2,128], index: 0, kind: input, shape index: {}]
  %s1 = inlined_call_operand.hbm [shape: f32[2,104,128], index: 1, kind: input, shape index: {}]
  %s2 = inlined_call_operand.hbm [shape: f32[104,128], index: 2, kind: input, shape index: {}]
  %s3 = inlined_call_operand.hbm [shape: f32[104,128], index: 3, kind: input, shape index: {}]
  %s4 = inlined_call_operand.<no memory space> [shape: f32[1,1], index: 4, kind: input, shape index: {}]
  %s5 = inlined_call_operand.vmem [shape: f32[1,128], index: 5, kind: output, shape index: {}]
  %s6 = sld [smem:[#allocation0]]
  $region42: #{cem_forward.1} parent=0
    _
  %s8 = ssub.s32 1, %s6
  %s9 = scalar_select 0, %s8, %s6
  %10 = sst [smem:[#allocation2]] %s4
  $region1: #{cem_forward.1} parent=0
    #allocation3 [shape = 'u8[106496]{0}', space=vmem, size = 0x1a000, scoped, tag = 'input window, operand 1, single buffered']
    #allocation4 [shape = 's32[1]{0}', space=sflag, size = 0x4, scoped, tag = 'scoped memory for cem_forward.1']
    #allocation5 [shape = 'u8[53248]{0}', space=vmem, size = 0xd000, scoped, tag = 'input window, operand 2, single buffered']
    #allocation6 [shape = 's32[1]{0}', space=sflag, size = 0x4, scoped, tag = 'scoped memory for cem_forward.1']
    #allocation7 [shape = 'u8[53248]{0}', space=vmem, size = 0xd000, scoped, tag = 'input window, operand 3, single buffered']
    %11 = vsyncpa [#allocation4], 0
    %12 = vsyncpa [#allocation6], 0
    // Predicated region
    $region2: #{cem_forward.1} parent=1 // pred_check
      _
    $region3: #{cem_forward.1} parent=1 // pred_check_branch
      %14 = sbr.rel (0) target = $region5
    $region4: #{cem_forward.1} parent=1 // pred_region
      _
    $region5: #{cem_forward.1} parent=1 // pred_fallthru
      _
    // Predicated region
    $region6: #{cem_forward.1} parent=1 // pred_check
      _
    $region7: #{cem_forward.1} parent=1 // pred_check_branch
      %16 = sbr.rel (0) target = $region9
    $region8: #{cem_forward.1} parent=1 // pred_region
      %s18 = ssub.s32 3328, 3328
      %19 = vsyncadd [#allocation4], %s18
      %s20 = sshll.u32 [#allocation3], 4
      %s21 = int_to_ptr.vmem [resolvable:$true] %s20
      %26 = dma.hbm_to_vmem [thread:$0]  %s1, 3328, %s21, [#allocation4], 128, 128, 8
    $region9: #{cem_forward.1} parent=1 // pred_fallthru
      _
    // Predicated region
    $region10: #{cem_forward.1} parent=1 // pred_check
      _
    $region11: #{cem_forward.1} parent=1 // pred_check_branch
      %28 = sbr.rel (0) target = $region13
    $region12: #{cem_forward.1} parent=1 // pred_region
      %s30 = ssub.s32 1664, 1664
      %31 = vsyncadd [#allocation6], %s30
      %s32 = sshll.u32 [#allocation5], 4
      %s33 = int_to_ptr.vmem [resolvable:$true] %s32
      %38 = dma.hbm_to_vmem [thread:$0]  %s2, 1664, %s33, [#allocation6], 128, 128, 8
    $region13: #{cem_forward.1} parent=1 // pred_fallthru
      _
    // Predicated region
    $region14: #{cem_forward.1} parent=1 // pred_check
      _
    $region15: #{cem_forward.1} parent=1 // pred_check_branch
      %40 = sbr.rel (0) target = $region17
    $region16: #{cem_forward.1} parent=1 // pred_region
      %s42 = ssub.s32 1664, 1664
      %43 = vsyncadd [#allocation6], %s42
      %s44 = sshll.u32 [#allocation7], 4
      %s45 = int_to_ptr.vmem [resolvable:$true] %s44
      %50 = dma.hbm_to_vmem [thread:$0]  %s3, 1664, %s45, [#allocation6], 128, 128, 8
    $region17: #{cem_forward.1} parent=1 // pred_fallthru
      _
    // Predicated region
    $region18: #{cem_forward.1} parent=1 // pred_check
      _
    $region19: #{cem_forward.1} parent=1 // pred_check_branch
      %52 = sbr.rel (0) target = $region21
    $region20: #{cem_forward.1} parent=1 // pred_region
      _
    $region21: #{cem_forward.1} parent=1 // pred_fallthru
      _
    // Predicated region
    $region22: #{cem_forward.1} parent=1 // pred_check
      _
    $region23: #{cem_forward.1} parent=1 // pred_check_branch
      %54 = sbr.rel (0) target = $region25
    $region24: #{cem_forward.1} parent=1 // pred_region
      %55 = dma.done [#allocation4], 3328
    $region25: #{cem_forward.1} parent=1 // pred_fallthru
      _
    // Predicated region
    $region26: #{cem_forward.1} parent=1 // pred_check
      _
    $region27: #{cem_forward.1} parent=1 // pred_check_branch
      %57 = sbr.rel (0) target = $region29
    $region28: #{cem_forward.1} parent=1 // pred_region
      %58 = dma.done [#allocation6], 1664
    $region29: #{cem_forward.1} parent=1 // pred_fallthru
      _
    // Predicated region
    $region30: #{cem_forward.1} parent=1 // pred_check
      _
    $region31: #{cem_forward.1} parent=1 // pred_check_branch
      %60 = sbr.rel (0) target = $region33
    $region32: #{cem_forward.1} parent=1 // pred_region
      %61 = dma.done [#allocation6], 1664
    $region33: #{cem_forward.1} parent=1 // pred_fallthru
      _
    %s62 = sld [smem:[#allocation2]]
    %v63 = vld [vmem:[#allocation5] sm:$0xff]
    %v64 = vld [vmem:[#allocation5 + $0x8] sm:$0xff]
    %v65 = vld [vmem:[#allocation5 + $0x10] sm:$0xff]
    %v66 = vld [vmem:[#allocation5 + $0x18] sm:$0xff]
    %v67 = vld [vmem:[#allocation5 + $0x20] sm:$0xff]
    %v68 = vld [vmem:[#allocation5 + $0x28] sm:$0xff]
    %v69 = vld [vmem:[#allocation5 + $0x30] sm:$0xff]
    %v70 = vld [vmem:[#allocation5 + $0x38] sm:$0xff]
    %v71 = vld [vmem:[#allocation5 + $0x40] sm:$0xff]
    %v72 = vld [vmem:[#allocation5 + $0x48] sm:$0xff]
    %v73 = vld [vmem:[#allocation5 + $0x50] sm:$0xff]
    %v74 = vld [vmem:[#allocation5 + $0x58] sm:$0xff]
    %v75 = vld [vmem:[#allocation5 + $0x60] sm:$0xff]
    %v76 = vld [vmem:[%s0] sm:$0x1]
    %v77 = vld [vmem:[#allocation3] sm:$0xff]
    %v78 = vld [vmem:[#allocation3 + $0x8] sm:$0xff]
    %v79 = vld [vmem:[#allocation3 + $0x10] sm:$0xff]
    %v80 = vld [vmem:[#allocation3 + $0x18] sm:$0xff]
    %v81 = vld [vmem:[#allocation3 + $0x20] sm:$0xff]
    %v82 = vld [vmem:[#allocation3 + $0x28] sm:$0xff]
    %v83 = vld [vmem:[#allocation3 + $0x30] sm:$0xff]
    %v84 = vld [vmem:[#allocation3 + $0x38] sm:$0xff]
    %v85 = vld [vmem:[#allocation3 + $0x40] sm:$0xff]
    %v86 = vld [vmem:[#allocation3 + $0x48] sm:$0xff]
    %v87 = vld [vmem:[#allocation3 + $0x50] sm:$0xff]
    %v88 = vld [vmem:[#allocation3 + $0x58] sm:$0xff]
    %v89 = vld [vmem:[#allocation3 + $0x60] sm:$0xff]
    %v90 = vlaneseq
    %v91 = vshrl.u32 %v90, 7
    %v92 = vsub.s32 0, %v91
    %v93 = vrot.slane %v76, %v92
    %v94 = vmul.f32 %v93, %v77
    %v95 = vmul.f32 %v93, %v78
    %v96 = vmul.f32 %v93, %v79
    %v97 = vmul.f32 %v93, %v80
    %v98 = vmul.f32 %v93, %v81
    %v99 = vmul.f32 %v93, %v82
    %v100 = vmul.f32 %v93, %v83
    %v101 = vmul.f32 %v93, %v84
    %v102 = vmul.f32 %v93, %v85
    %v103 = vmul.f32 %v93, %v86
    %v104 = vmul.f32 %v93, %v87
    %v105 = vmul.f32 %v93, %v88
    %v106 = vmul.f32 %v93, %v89
    %v107 = vadd.f32 %v63, %v94
    %v108 = vadd.f32 %v64, %v95
    %v109 = vadd.f32 %v65, %v96
    %v110 = vadd.f32 %v66, %v97
    %v111 = vadd.f32 %v67, %v98
    %v112 = vadd.f32 %v68, %v99
    %v113 = vadd.f32 %v69, %v100
    %v114 = vadd.f32 %v70, %v101
    %v115 = vadd.f32 %v71, %v102
    %v116 = vadd.f32 %v72, %v103
    %v117 = vadd.f32 %v73, %v104
    %v118 = vadd.f32 %v74, %v105
    %v119 = vadd.f32 %v75, %v106
    %v120 = vld [vmem:[%s0 + $0x1] sm:$0x1]
    %s121 = scalar_lea.vmem [#allocation3], 104
    %v122 = vld [vmem:[%s121] sm:$0xff]
    %v123 = vld [vmem:[%s121 + $0x8] sm:$0xff]
    %v124 = vld [vmem:[%s121 + $0x10] sm:$0xff]
    %v125 = vld [vmem:[%s121 + $0x18] sm:$0xff]
    %v126 = vld [vmem:[%s121 + $0x20] sm:$0xff]
    %v127 = vld [vmem:[%s121 + $0x28] sm:$0xff]
    %v128 = vld [vmem:[%s121 + $0x30] sm:$0xff]
    %v129 = vld [vmem:[%s121 + $0x38] sm:$0xff]
    %v130 = vld [vmem:[%s121 + $0x40] sm:$0xff]
    %v131 = vld [vmem:[%s121 + $0x48] sm:$0xff]
    %v132 = vld [vmem:[%s121 + $0x50] sm:$0xff]
    %v133 = vld [vmem:[%s121 + $0x58] sm:$0xff]
    %v134 = vld [vmem:[%s121 + $0x60] sm:$0xff]
    %v135 = vlaneseq
    %v136 = vshrl.u32 %v135, 7
    %v137 = vsub.s32 0, %v136
    %v138 = vrot.slane %v120, %v137
    %v139 = vmul.f32 %v138, %v122
    %v140 = vmul.f32 %v138, %v123
    %v141 = vmul.f32 %v138, %v124
    %v142 = vmul.f32 %v138, %v125
    %v143 = vmul.f32 %v138, %v126
    %v144 = vmul.f32 %v138, %v127
    %v145 = vmul.f32 %v138, %v128
    %v146 = vmul.f32 %v138, %v129
    %v147 = vmul.f32 %v138, %v130
    %v148 = vmul.f32 %v138, %v131
    %v149 = vmul.f32 %v138, %v132
    %v150 = vmul.f32 %v138, %v133
    %v151 = vmul.f32 %v138, %v134
    %v152 = vadd.f32 %v107, %v139
    %v153 = vadd.f32 %v108, %v140
    %v154 = vadd.f32 %v109, %v141
    %v155 = vadd.f32 %v110, %v142
    %v156 = vadd.f32 %v111, %v143
    %v157 = vadd.f32 %v112, %v144
    %v158 = vadd.f32 %v113, %v145
    %v159 = vadd.f32 %v114, %v146
    %v160 = vadd.f32 %v115, %v147
    %v161 = vadd.f32 %v116, %v148
    %v162 = vadd.f32 %v117, %v149
    %v163 = vadd.f32 %v118, %v150
    %v164 = vadd.f32 %v119, %v151
    %v165 = vmax.f32 %v152, 0.0
    %v166 = vmax.f32 %v153, 0.0
    %v167 = vmax.f32 %v154, 0.0
    %v168 = vmax.f32 %v155, 0.0
    %v169 = vmax.f32 %v156, 0.0
    %v170 = vmax.f32 %v157, 0.0
    %v171 = vmax.f32 %v158, 0.0
    %v172 = vmax.f32 %v159, 0.0
    %v173 = vmax.f32 %v160, 0.0
    %v174 = vmax.f32 %v161, 0.0
    %v175 = vmax.f32 %v162, 0.0
    %v176 = vmax.f32 %v163, 0.0
    %v177 = vmax.f32 %v164, 0.0
    %v178 = vld [vmem:[#allocation7] sm:$0xff]
    %v179 = vld [vmem:[#allocation7 + $0x8] sm:$0xff]
    %v180 = vld [vmem:[#allocation7 + $0x10] sm:$0xff]
    %v181 = vld [vmem:[#allocation7 + $0x18] sm:$0xff]
    %v182 = vld [vmem:[#allocation7 + $0x20] sm:$0xff]
    %v183 = vld [vmem:[#allocation7 + $0x28] sm:$0xff]
    %v184 = vld [vmem:[#allocation7 + $0x30] sm:$0xff]
    %v185 = vld [vmem:[#allocation7 + $0x38] sm:$0xff]
    %v186 = vld [vmem:[#allocation7 + $0x40] sm:$0xff]
    %v187 = vld [vmem:[#allocation7 + $0x48] sm:$0xff]
    %v188 = vld [vmem:[#allocation7 + $0x50] sm:$0xff]
    %v189 = vld [vmem:[#allocation7 + $0x58] sm:$0xff]
    %v190 = vld [vmem:[#allocation7 + $0x60] sm:$0xff]
    %v191 = vmul.f32 %v165, %v178
    %v192 = vmul.f32 %v166, %v179
    %v193 = vmul.f32 %v167, %v180
    %v194 = vmul.f32 %v168, %v181
    %v195 = vmul.f32 %v169, %v182
    %v196 = vmul.f32 %v170, %v183
    %v197 = vmul.f32 %v171, %v184
    %v198 = vmul.f32 %v172, %v185
    %v199 = vmul.f32 %v173, %v186
    %v200 = vmul.f32 %v174, %v187
    %v201 = vmul.f32 %v175, %v188
    %v202 = vmul.f32 %v176, %v189
    %v203 = vmul.f32 %v177, %v190
    %v204 = vadd.f32 %v191, %v192
    %v205 = vadd.f32 %v204, %v193
    %v206 = vadd.f32 %v205, %v194
    %v207 = vadd.f32 %v206, %v195
    %v208 = vadd.f32 %v207, %v196
    %v209 = vadd.f32 %v208, %v197
    %v210 = vadd.f32 %v209, %v198
    %v211 = vadd.f32 %v210, %v199
    %v212 = vadd.f32 %v211, %v200
    %v213 = vadd.f32 %v212, %v201
    %v214 = vadd.f32 %v213, %v202
    %v215 = vadd.f32 %v214, %v203
    %v216 = vrot.slane %v215, 4
    %v217 = vadd.f32 %v215, %v216
    %v218 = vrot.slane %v217, 2
    %v219 = vadd.f32 %v217, %v218
    %v220 = vrot.slane %v219, 1
    %v221 = vadd.f32 %v219, %v220
    %v222 = vstv %s62
    %v223 = vadd.f32 %v221, %v222
    %224 = vst [vmem:[%s5] sm:$0x1] %v223
    // Predicated region
    $region34: #{cem_forward.1} parent=1 // pred_check
      _
    $region35: #{cem_forward.1} parent=1 // pred_check_branch
      %226 = sbr.rel (0) target = $region37
    $region36: #{cem_forward.1} parent=1 // pred_region
      _
    $region37: #{cem_forward.1} parent=1 // pred_fallthru
      _
    // Predicated region
    $region38: #{cem_forward.1} parent=1 // pred_check
      _
    $region39: #{cem_forward.1} parent=1 // pred_check_branch
      %228 = sbr.rel (0) target = $region41
    $region40: #{cem_forward.1} parent=1 // pred_region
      _
    $region41: #{cem_forward.1} parent=1 // pred_fallthru
      _
    %229 = vsyncpa [#allocation4], 1
    %230 = vsyncpa [#allocation6], 1

</llo_original>
